<compile_context>
chip_gen: v6e
topology: v6e:2x2x1
jax: 0.10.0
libtpu: 0.0.40
codegen_flags: <defaults>
</compile_context>

<pallas_src>
import numpy as np
import jax
import jax.numpy as jnp
from jax.experimental import pallas as pl
from jax.experimental.pallas import tpu as pltpu

N_TERMS = 5          # matches Quantization(n=5)
_LANES = 128


def _quantization_kernel(x_ref, o_ref):
    x = x_ref[...].astype(jnp.float32)
    x255 = x * 255.0

    # Exact periodic range reduction: sin(2*pi*i*x255) == sin(2*pi*i*r) for
    # r = x255 - round(x255), |r| <= 0.5  =>  |theta| <= pi.
    r = x255 - jnp.round(x255)
    theta = np.float32(2.0 * np.pi) * r

    # Single sin/cos, then angle-addition recurrence for the remaining
    # harmonics: s_{i+1} = s_i*c1 + c_i*s1, c_{i+1} = c_i*c1 - s_i*s1.
    s1 = jnp.sin(theta)
    c1 = jnp.cos(theta)

    out = x255
    s_i, c_i = s1, c1
    flag = -1.0
    for i in range(1, N_TERMS + 1):           # static unroll, n is small
        coef = np.float32(flag / np.pi / i)   # compile-time scalar
        out = out + coef * s_i
        flag = -flag
        if i < N_TERMS:
            s_i, c_i = s_i * c1 + c_i * s1, c_i * c1 - s_i * s1

    o_ref[...] = (out * np.float32(1.0 / 255.0)).astype(o_ref.dtype)


def quantization(inp: jax.Array, *, max_block_rows: int = 2048) -> jax.Array:
    """Applies the Quantization forward pass elementwise to `inp`."""
    orig_shape = inp.shape
    orig_dtype = inp.dtype
    total = int(np.prod(orig_shape)) if len(orig_shape) else 1

    itemsize = jnp.dtype(orig_dtype).itemsize
    # Sublane multiple for full-vreg tiles: 8 (f32), 16 (bf16/f16), 32 (8-bit).
    sub_mult = max(8, 32 // max(itemsize, 1))
    quantum = sub_mult * _LANES

    flat = jnp.ravel(inp)
    padded_total = -(-total // quantum) * quantum
    if padded_total != total:                 # only pad when misaligned
        flat = jnp.pad(flat, (0, padded_total - total))
    rows = padded_total // _LANES
    x2d = flat.reshape(rows, _LANES)

    # ~1 MiB (f32) blocks; ensure >= 2 grid blocks when possible so the
    # "parallel" grid axis can shard across both v7x TensorCores.
    tile_rows = min(max_block_rows, rows)
    if rows >= 2 * sub_mult and -(-rows // tile_rows) < 2:
        tile_rows = -(-((rows + 1) // 2) // sub_mult) * sub_mult
    tile_rows = max(sub_mult, (tile_rows // sub_mult) * sub_mult)
    grid = (-(-rows // tile_rows),)           # edge block handled by Pallas

    out2d = pl.pallas_call(
        _quantization_kernel,
        out_shape=jax.ShapeDtypeStruct((rows, _LANES), orig_dtype),
        grid_spec=pltpu.PrefetchScalarGridSpec(
            num_scalar_prefetch=0,
            grid=grid,
            in_specs=[pl.BlockSpec((tile_rows, _LANES), lambda i: (i, 0))],
            out_specs=pl.BlockSpec((tile_rows, _LANES), lambda i: (i, 0)),
        ),
        compiler_params=pltpu.CompilerParams(
            dimension_semantics=("parallel",)),
    )(x2d)

    out_flat = out2d.reshape(-1)
    if padded_total != total:
        out_flat = out_flat[:total]
    return out_flat.reshape(orig_shape)


def _quantization_ref_jax(inp: jnp.ndarray) -> jnp.ndarray:
    """Pure-JAX f32 reference mirroring the PyTorch forward literally."""
    out = inp * 255.0
    flag = -1.0
    for i in range(1, N_TERMS + 1):
        out = out + flag / np.pi / i * jnp.sin(2 * i * np.pi * inp * 255.0)
        flag = flag * -1.0
    return out / 255.0


def _quantization_ref_np64(inp64: np.ndarray) -> np.ndarray:
    """float64 numpy reference (mathematical spec)."""
    out = inp64 * 255.0
    flag = -1.0
    for i in range(1, N_TERMS + 1):
        out = out + flag / np.pi / i * np.sin(2 * i * np.pi * inp64 * 255.0)
        flag = flag * -1.0
    return out / 255.0


if __name__ == "__main__":
    key = jax.random.PRNGKey(0)
    x = jax.random.uniform(key, (2, 4, 16, 16), dtype=jnp.float32)  # NCHW-like

    y = jax.block_until_ready(quantization(x))

    # Tight check against the float64 mathematical reference.
    ref64 = _quantization_ref_np64(np.asarray(x, dtype=np.float64))
    np.testing.assert_allclose(np.asarray(y, dtype=np.float64), ref64,
                               rtol=1e-5, atol=1e-5)

    # Check against the literal f32 formula (faithful to the PyTorch module).
    ref32 = np.asarray(_quantization_ref_jax(x))
    np.testing.assert_allclose(np.asarray(y), ref32, rtol=1e-4, atol=1e-4)

    assert y.shape == x.shape and y.dtype == x.dtype
    print("KERNEL_OK")
</pallas_src>

<mosaic_0001>
module attributes {stable_mosaic.version = 11 : i64} {
  func.func @_quantization_kernel(%arg0: i32, %arg1: memref<8x128xf32, #tpu.memory_space<vmem>>, %arg2: memref<8x128xf32, #tpu.memory_space<vmem>>) attributes {dimension_semantics = [#tpu.dimension_semantics<parallel>], iteration_bounds = array<i64: 2>, scalar_prefetch = 0 : i64, scratch_operands = 0 : i64, tpu.core_type = #tpu.core_type<tc>, window_params = [{transform_indices = @transform_0, window_bounds = array<i64: 8, 128>}, {transform_indices = @transform_1, window_bounds = array<i64: 8, 128>}]} {
    %c0 = arith.constant 0 : index
    %c0_0 = arith.constant 0 : index
    %0 = vector.load %arg1[%c0, %c0_0] : memref<8x128xf32, #tpu.memory_space<vmem>>, vector<8x128xf32>
    %cst = arith.constant 2.550000e+02 : f32
    %1 = vector.broadcast %cst : f32 to vector<8x128xf32>
    %2 = arith.mulf %0, %1 : vector<8x128xf32>
    %3 = math.roundeven %2 : vector<8x128xf32>
    %4 = arith.subf %2, %3 : vector<8x128xf32>
    %cst_1 = arith.constant 6.28318548 : f32
    %5 = vector.broadcast %cst_1 : f32 to vector<8x128xf32>
    %6 = arith.mulf %5, %4 : vector<8x128xf32>
    %7 = math.sin %6 : vector<8x128xf32>
    %8 = math.cos %6 : vector<8x128xf32>
    %cst_2 = arith.constant -0.318309873 : f32
    %9 = vector.broadcast %cst_2 : f32 to vector<8x128xf32>
    %10 = arith.mulf %9, %7 : vector<8x128xf32>
    %11 = arith.addf %2, %10 : vector<8x128xf32>
    %12 = arith.mulf %7, %8 : vector<8x128xf32>
    %13 = arith.mulf %8, %7 : vector<8x128xf32>
    %14 = arith.addf %12, %13 : vector<8x128xf32>
    %15 = arith.mulf %8, %8 : vector<8x128xf32>
    %16 = arith.mulf %7, %7 : vector<8x128xf32>
    %17 = arith.subf %15, %16 : vector<8x128xf32>
    %cst_3 = arith.constant 0.159154937 : f32
    %18 = vector.broadcast %cst_3 : f32 to vector<8x128xf32>
    %19 = arith.mulf %18, %14 : vector<8x128xf32>
    %20 = arith.addf %11, %19 : vector<8x128xf32>
    %21 = arith.mulf %14, %8 : vector<8x128xf32>
    %22 = arith.mulf %17, %7 : vector<8x128xf32>
    %23 = arith.addf %21, %22 : vector<8x128xf32>
    %24 = arith.mulf %17, %8 : vector<8x128xf32>
    %25 = arith.mulf %14, %7 : vector<8x128xf32>
    %26 = arith.subf %24, %25 : vector<8x128xf32>
    %cst_4 = arith.constant -0.106103294 : f32
    %27 = vector.broadcast %cst_4 : f32 to vector<8x128xf32>
    %28 = arith.mulf %27, %23 : vector<8x128xf32>
    %29 = arith.addf %20, %28 : vector<8x128xf32>
    %30 = arith.mulf %23, %8 : vector<8x128xf32>
    %31 = arith.mulf %26, %7 : vector<8x128xf32>
    %32 = arith.addf %30, %31 : vector<8x128xf32>
    %33 = arith.mulf %26, %8 : vector<8x128xf32>
    %34 = arith.mulf %23, %7 : vector<8x128xf32>
    %35 = arith.subf %33, %34 : vector<8x128xf32>
    %cst_5 = arith.constant 0.0795774683 : f32
    %36 = vector.broadcast %cst_5 : f32 to vector<8x128xf32>
    %37 = arith.mulf %36, %32 : vector<8x128xf32>
    %38 = arith.addf %29, %37 : vector<8x128xf32>
    %39 = arith.mulf %32, %8 : vector<8x128xf32>
    %40 = arith.mulf %35, %7 : vector<8x128xf32>
    %41 = arith.addf %39, %40 : vector<8x128xf32>
    %cst_6 = arith.constant -0.0636619776 : f32
    %42 = vector.broadcast %cst_6 : f32 to vector<8x128xf32>
    %43 = arith.mulf %42, %41 : vector<8x128xf32>
    %44 = arith.addf %38, %43 : vector<8x128xf32>
    %cst_7 = arith.constant 0.00392156886 : f32
    %45 = vector.broadcast %cst_7 : f32 to vector<8x128xf32>
    %46 = arith.mulf %44, %45 : vector<8x128xf32>
    %c0_8 = arith.constant 0 : index
    %c0_9 = arith.constant 0 : index
    %47 = vector.load %arg2[%c0_8, %c0_9] : memref<8x128xf32, #tpu.memory_space<vmem>>, vector<8x128xf32>
    tpu.vector_store %arg2[%c0_8, %c0_9], %46 {strides = array<i32>} : memref<8x128xf32, #tpu.memory_space<vmem>>, vector<8x128xf32>,
    return
  }
  func.func @transform_0(%arg0: i32) -> (i32, i32) {
    %c0_i32 = arith.constant 0 : i32
    %c0_i32_0 = arith.constant 0 : i32
    return %arg0, %c0_i32 : i32, i32
  }
  func.func @transform_1(%arg0: i32) -> (i32, i32) {
    %c0_i32 = arith.constant 0 : i32
    %c0_i32_0 = arith.constant 0 : i32
    return %arg0, %c0_i32 : i32, i32
  }
}

</mosaic_0001>

<llo_original>
// kernel: tpu_custom_call.1
$region0: #{tpu_custom_call.1}
  #allocation0 [shape = 'u32[]', space=smem, size = 0x4, offset = 0x4, fixed_abs, tag = 'smem constant byte address 0x4 - core index']
  #allocation1 [shape = 'u32[144,128]{1,0:T(1,128)}', space=vmem, size = 0x12000, scoped, tag = 'internal scratch']
  %s0 = inlined_call_operand.hbm [shape: f32[16,128], index: 0, kind: input, shape index: {}]
  %s1 = inlined_call_operand.hbm [shape: f32[16,128], index: 1, kind: output, shape index: {}]
  %s2 = sld [smem:[#allocation0]]
  $region41: #{tpu_custom_call.1} parent=0
    _
  %s4 = ssub.s32 1, %s2
  %s5 = scalar_select 0, %s4, %s2
  $region1: #{tpu_custom_call.1} parent=0
    #allocation2 [shape = 'u8[8192]{0}', space=vmem, size = 0x2000, scoped, tag = 'input window, operand 0']
    #allocation3 [shape = 's32[2]{0}', space=sflag, size = 0x8, scoped, tag = 'scoped memory for tpu_custom_call.1']
    #allocation4 [shape = 's32[2]{0}', space=sflag, size = 0x8, scoped, tag = 'scoped memory for tpu_custom_call.1']
    #allocation5 [shape = 'u8[8192]{0}', space=vmem, size = 0x2000, scoped, tag = 'output window, operand 0']
    %6 = vsyncpa [#allocation3], 0
    %s7 = scalar_lea.sflag [#allocation3], 1
    %8 = vsyncpa %s7, 0
    %9 = vsyncpa [#allocation4], 0
    %s10 = scalar_lea.sflag [#allocation4], 1
    %11 = vsyncpa %s10, 0
    loop: start=0, step=1, limit=4
    $region2: #{tpu_custom_call.1} parent=1 // loop_pre_header
      _
    $region3: #{tpu_custom_call.1} parent=1 // loop_header
      %s13 = sphi 0, %s17
      %p14 = scmp.ge.s32.totalorder %s13, 4
      %s23 = sphi 0, %s25
      %s26 = sphi 0, %s23
      %s27 = sphi 0, %s26
      %s43 = sphi 0, %s27
      %s49 = sphi 0, %s51
      %s52 = sphi 0, %s49
      %s53 = sphi 0, %s52
      %s69 = sphi 0, %s53
    $region4: #{tpu_custom_call.1} parent=1 // loop_header_branch
      %16 = sbr.rel (%p14) target = $region8
    $region5: #{tpu_custom_call.1} parent=1 // loop_body
      %s18 = ssub.s32 %s13, 1
      %s19 = ssub.s32 %s13, 2
      %s20 = sadd.s32 %s13, 1
      %s21 = ssub.s32 %s13, %s20
      %p22 = scmp.eq.s32.totalorder %s21, 0
      %s24 = sadd.s32 %s23, 1
      %s25 = scalar_select %p22, %s23, %s24
      %p28 = pneg %p22
      %p29 = scmp.eq.s32.totalorder %s13, 1
      %p30 = por %p28, %p29
      %p31 = scmp.ne.s32.totalorder %s23, %s26
      %p32 = scmp.eq.s32.totalorder %s13, 0
      %p33 = por %p31, %p32
      %p34 = scmp.ne.s32.totalorder %s23, %s26
      %p35 = scmp.eq.s32.totalorder %s18, 1
      %p36 = por %p34, %p35
      %p37 = scmp.ne.s32.totalorder %s26, %s27
      %p38 = scmp.eq.s32.totalorder %s18, 0
      %p39 = por %p37, %p38
      %p40 = scmp.ne.s32.totalorder %s26, %s27
      %p41 = scmp.eq.s32.totalorder %s19, 1
      %p42 = por %p40, %p41
      %p44 = scmp.ne.s32.totalorder %s27, %s43
      %p45 = scmp.eq.s32.totalorder %s19, 0
      %p46 = por %p44, %p45
      %s47 = ssub.s32 %s13, %s20
      %p48 = scmp.eq.s32.totalorder %s47, 0
      %s50 = sadd.s32 %s49, 1
      %s51 = scalar_select %p48, %s49, %s50
      %p54 = pneg %p48
      %p55 = scmp.eq.s32.totalorder %s13, 1
      %p56 = por %p54, %p55
      %p57 = scmp.ne.s32.totalorder %s49, %s52
      %p58 = scmp.eq.s32.totalorder %s13, 0
      %p59 = por %p57, %p58
      %p60 = scmp.ne.s32.totalorder %s49, %s52
      %p61 = scmp.eq.s32.totalorder %s18, 1
      %p62 = por %p60, %p61
      %p63 = scmp.ne.s32.totalorder %s52, %s53
      %p64 = scmp.eq.s32.totalorder %s18, 0
      %p65 = por %p63, %p64
      %p66 = scmp.ne.s32.totalorder %s52, %s53
      %p67 = scmp.eq.s32.totalorder %s19, 1
      %p68 = por %p66, %p67
      %p70 = scmp.ne.s32.totalorder %s53, %s69
      %p71 = scmp.eq.s32.totalorder %s19, 0
      %p72 = por %p70, %p71
      %p73 = scmp.le.s32.totalorder 1, %s13
      %p74 = scmp.lt.s32.totalorder %s13, 3
      %p75 = pnand %p73, %p74
      %p76 = pneg %p75
      // Predicated region
      $region9: #{tpu_custom_call.1} parent=5 // pred_check
        _
      $region10: #{tpu_custom_call.1} parent=5 // pred_check_branch
        %78 = sbr.rel (%p75) target = $region12
      $region11: #{tpu_custom_call.1} parent=5 // pred_region
        %s79 = ssub.s32 %s13, 1
      $region12: #{tpu_custom_call.1} parent=5 // pred_fallthru
        _
      %p80 = scmp.lt.s32.totalorder %s13, 2
      // Predicated region
      $region13: #{tpu_custom_call.1} parent=5 // pred_check
        %p81 = pneg %p80
      $region14: #{tpu_custom_call.1} parent=5 // pred_check_branch
        %83 = sbr.rel (%p81) target = $region16
      $region15: #{tpu_custom_call.1} parent=5 // pred_region
        // Predicated region
        $region17: #{tpu_custom_call.1} parent=15 // pred_check
          %p84 = pneg %p33
        $region18: #{tpu_custom_call.1} parent=15 // pred_check_branch
          %86 = sbr.rel (%p84) target = $region20
        $region19: #{tpu_custom_call.1} parent=15 // pred_region
          %s87 = sand.u32 %s23, 1
          %s88 = scalar_lea.sflag [#allocation3], %s87
          %s89 = sand.u32 %s23, 1
          %s90 = smul.addr %s89, 8
          %s91 = scalar_lea.vmem [#allocation2], %s90
          %s93 = ssub.s32 128, 128
          %94 = vsyncadd %s88, %s93
          %s95 = smul.addr %s13, 128
          %s96 = scalar_lea.hbm %s0, %s95
          %s98 = sshll.u32 %s91, 4
          %s99 = int_to_ptr.vmem [resolvable:$true] %s98
          %101 = dma.hbm_to_vmem [thread:$0]  %s96, 128, %s99, %s88
        $region20: #{tpu_custom_call.1} parent=15 // pred_fallthru
          _
      $region16: #{tpu_custom_call.1} parent=5 // pred_fallthru
        _
      %p102 = scmp.le.s32.totalorder 1, %s13
      %p103 = scmp.lt.s32.totalorder %s13, 3
      %p104 = pnand %p102, %p103
      %p105 = pneg %p104
      // Predicated region
      $region21: #{tpu_custom_call.1} parent=5 // pred_check
        _
      $region22: #{tpu_custom_call.1} parent=5 // pred_check_branch
        %107 = sbr.rel (%p104) target = $region24
      $region23: #{tpu_custom_call.1} parent=5 // pred_region
        %s108 = ssub.s32 %s13, 1
        %s109 = sand.u32 %s26, 1
        %s110 = scalar_lea.sflag [#allocation3], %s109
        %s111 = sand.u32 %s26, 1
        %s112 = smul.addr %s111, 8
        %s113 = scalar_lea.vmem [#allocation2], %s112
        // Predicated region
        $region25: #{tpu_custom_call.1} parent=23 // pred_check
          %p114 = pneg %p39
        $region26: #{tpu_custom_call.1} parent=23 // pred_check_branch
          %116 = sbr.rel (%p114) target = $region28
        $region27: #{tpu_custom_call.1} parent=23 // pred_region
          %117 = dma.done %s110, 128
        $region28: #{tpu_custom_call.1} parent=23 // pred_fallthru
          _
        %s118 = sand.u32 %s26, 1
        %s119 = scalar_lea.sflag [#allocation3], %s118
        %s120 = sand.u32 %s26, 1
        %s121 = smul.addr %s120, 8
        %s122 = scalar_lea.vmem [#allocation2], %s121
        %p123 = pneg %p39
        %p124 = pneg %p36
        %p125 = pneg %p65
        %p126 = pneg %p62
        %s127 = sand.u32 %s52, 1
        %s128 = scalar_lea.sflag [#allocation4], %s127
        %s129 = sand.u32 %s52, 1
        %s130 = smul.addr %s129, 8
        %s131 = scalar_lea.vmem [#allocation5], %s130
        %v132 = vld [vmem:[%s113] sm:$0xff]
        %v133 = vmul.f32 %v132, 255.0
        %v134 = vround.ne.pseudo %v133
        %v135 = vsub.f32 %v133, %v134
        %v136 = vmul.f32 %v135, 6.2831855
        %v137 = vand.u32 2147483647, %v136
        %vm138 = vcmp.le.f32.partialorder %v137, 0.7853982
        %vm139 = vcmp.lt.s32.totalorder %v136, 0
        %v140 = vand.u32 %v136, 2139095040
        %v141 = vshrl.u32 %v140, 23
        %v142 = vsub.s32 %v141, 127
        %v143 = vand.u32 2147483647, %v136
        %v144 = vand.u32 %v143, 8388607
        %v145 = vor.u32 %v144, 8388608
        %v146 = vsub.s32 0, %v145
        %v147 = vadd.s32 %v142, 1
        %vm148 = vcmp.gt.s32.totalorder %v147, 0
        %v149 = vsel %vm148, %v147, 0
        %v150 = vshrl.u32 %v149, 5
        %v151 = vand.u32 %v149, 31
        %v152 = vsub.s32 32, %v151
        %v153 = vshrl.u32 683565275, %v152
        %v154 = vshll.u32 683565275, %v151
        %v155 = vshrl.u32 2475754826, %v152
        %v156 = vor.u32 %v154, %v155
        %v157 = vshll.u32 2475754826, %v151
        %v158 = vshrl.u32 2131351028, %v152
        %v159 = vor.u32 %v157, %v158
        %v160 = vshll.u32 2131351028, %v151
        %v161 = vshrl.u32 2102212464, %v152
        %v162 = vor.u32 %v160, %v161
        %v163 = vshll.u32 2102212464, %v151
        %v164 = vshrl.u32 920167782, %v152
        %v165 = vor.u32 %v163, %v164
        %v166 = vshll.u32 920167782, %v151
        %v167 = vshrl.u32 1326507024, %v152
        %v168 = vor.u32 %v166, %v167
        %vm169 = vcmp.lt.s32.totalorder %v150, 1
        %vm170 = vcmp.lt.s32.totalorder %v150, 2
        %vm171 = vcmp.lt.s32.totalorder %v150, 3
        %vm172 = vcmp.lt.s32.totalorder %v150, 4
        %v173 = vsel %vm169, %v153, %v156
        %v174 = vsel %vm172, %v162, 2102212464
        %v175 = vsel %vm171, %v159, %v174
        %v176 = vsel %vm170, %v173, %v175
        %v177 = vsel %vm169, %v156, %v159
        %v178 = vsel %vm172, %v165, 920167782
        %v179 = vsel %vm171, %v162, %v178
        %v180 = vsel %vm170, %v177, %v179
        %v181 = vsel %vm169, %v159, %v162
        %v182 = vsel %vm172, %v168, 1326507024
        %v183 = vsel %vm171, %v165, %v182
        %v184 = vsel %vm170, %v181, %v183
        %v185 = vshll.u32 %v145, 8
        %v186 = vmul.u32.u64.compose %v185, %v184
        %v187 = vextract.low.u32 %v186
        %v188 = vextract.high.u32 %v186
        %v189 = vmul.u32.u64.compose %v185, %v180
        %v190 = vextract.low.u32 %v189
        %v191 = vextract.high.u32 %v189
        %v192 = vmul.u32 %v185, %v176
        %v193 = vadd.s32 %v188, %v190
        %vm194 = vc.u32 %v188, %v190
        %v195 = vadd.s32 %v191, 1
        %v196 = vsel %vm194, %v195, %v191
        %v197 = vadd.s32 %v192, %v196
        %v198 = vadd.s32 %v197, 536870912
        %v199 = vshrl.u32 %v198, 30
        %v200 = vshll.u32 %v199, 30
        %v201 = vsub.s32 %v197, %v200
        %vm202 = vcmp.lt.s32.totalorder %v201, 0
        %v203 = vsub.s32 0, %v201
        %v204 = vsel %vm202, %v203, %v201
        %v205 = vclz %v204
        %v206 = vsub.s32 %v205, 2
        %vm207 = vcmp.gt.s32.totalorder 0, %v206
        %v208 = vsel %vm207, 0, %v206
        %v209 = vsub.s32 32, %v208
        %v210 = vshll.u32 %v201, %v208
        %v211 = vshrl.u32 %v193, %v209
        %v212 = vor.u32 %v210, %v211
        %v213 = vsub.s32 4294967266, %v208
        %v214 = vadd.s32 %v213, 127
        %v215 = vshll.u32 %v214, 23
        %v216 = vor.u32 4788187, %v215
        %v217 = vand.u32 2147483647, %v216
        %v219 = vcvt.s32.f32 %v212
        %v220 = vmul.f32 %v219, %v217
        %v221 = vxor.u32 %v220, 2147483648
        %v222 = vsel %vm139, %v221, %v220
        %v223 = vsub.s32 4, %v199
        %v224 = vsel %vm139, %v223, %v199
        %v225 = vsel %vm138, %v136, %v222
        %v226 = vsel %vm138, 0, %v224
        %v227 = vcosq.f32.pop %v225
        %v228 = vsinq.f32.pop %v225
        %vm229 = vweird.f32 %v136
        %v230 = vadd.s32 %v226, 3
        %v231 = vand.u32 %v230, 3
        %vm232 = vcmp.lt.s32.totalorder %v231, 2
        %vm233 = vcmp.eq.s32.totalorder %v231, 0
        %v234 = vxor.u32 %v228, 2147483648
        %v235 = vsel %vm233, %v227, %v234
        %vm236 = vcmp.eq.s32.totalorder %v231, 2
        %v237 = vxor.u32 %v227, 2147483648
        %v238 = vsel %vm236, %v237, %v228
        %v239 = vsel %vm232, %v235, %v238
        %v240 = vsel %vm229, nan, %v239
        %v241 = vand.u32 2147483647, %v136
        %vm242 = vcmp.le.f32.partialorder %v241, 0.7853982
        %vm243 = vcmp.lt.s32.totalorder %v136, 0
        %v244 = vand.u32 %v136, 2139095040
        %v245 = vshrl.u32 %v244, 23
        %v246 = vsub.s32 %v245, 127
        %v247 = vand.u32 2147483647, %v136
        %v248 = vand.u32 %v247, 8388607
        %v249 = vor.u32 %v248, 8388608
        %v250 = vsub.s32 0, %v249
        %v251 = vadd.s32 %v246, 1
        %vm252 = vcmp.gt.s32.totalorder %v251, 0
        %v253 = vsel %vm252, %v251, 0
        %v254 = vshrl.u32 %v253, 5
        %v255 = vand.u32 %v253, 31
        %v256 = vsub.s32 32, %v255
        %v257 = vshrl.u32 683565275, %v256
        %v258 = vshll.u32 683565275, %v255
        %v259 = vshrl.u32 2475754826, %v256
        %v260 = vor.u32 %v258, %v259
        %v261 = vshll.u32 2475754826, %v255
        %v262 = vshrl.u32 2131351028, %v256
        %v263 = vor.u32 %v261, %v262
        %v264 = vshll.u32 2131351028, %v255
        %v265 = vshrl.u32 2102212464, %v256
        %v266 = vor.u32 %v264, %v265
        %v267 = vshll.u32 2102212464, %v255
        %v268 = vshrl.u32 920167782, %v256
        %v269 = vor.u32 %v267, %v268
        %v270 = vshll.u32 920167782, %v255
        %v271 = vshrl.u32 1326507024, %v256
        %v272 = vor.u32 %v270, %v271
        %vm273 = vcmp.lt.s32.totalorder %v254, 1
        %vm274 = vcmp.lt.s32.totalorder %v254, 2
        %vm275 = vcmp.lt.s32.totalorder %v254, 3
        %vm276 = vcmp.lt.s32.totalorder %v254, 4
        %v277 = vsel %vm273, %v257, %v260
        %v278 = vsel %vm276, %v266, 2102212464
        %v279 = vsel %vm275, %v263, %v278
        %v280 = vsel %vm274, %v277, %v279
        %v281 = vsel %vm273, %v260, %v263
        %v282 = vsel %vm276, %v269, 920167782
        %v283 = vsel %vm275, %v266, %v282
        %v284 = vsel %vm274, %v281, %v283
        %v285 = vsel %vm273, %v263, %v266
        %v286 = vsel %vm276, %v272, 1326507024
        %v287 = vsel %vm275, %v269, %v286
        %v288 = vsel %vm274, %v285, %v287
        %v289 = vshll.u32 %v249, 8
        %v290 = vmul.u32.u64.compose %v289, %v288
        %v291 = vextract.low.u32 %v290
        %v292 = vextract.high.u32 %v290
        %v293 = vmul.u32.u64.compose %v289, %v284
        %v294 = vextract.low.u32 %v293
        %v295 = vextract.high.u32 %v293
        %v296 = vmul.u32 %v289, %v280
        %v297 = vadd.s32 %v292, %v294
        %vm298 = vc.u32 %v292, %v294
        %v299 = vadd.s32 %v295, 1
        %v300 = vsel %vm298, %v299, %v295
        %v301 = vadd.s32 %v296, %v300
        %v302 = vadd.s32 %v301, 536870912
        %v303 = vshrl.u32 %v302, 30
        %v304 = vshll.u32 %v303, 30
        %v305 = vsub.s32 %v301, %v304
        %vm306 = vcmp.lt.s32.totalorder %v305, 0
        %v307 = vsub.s32 0, %v305
        %v308 = vsel %vm306, %v307, %v305
        %v309 = vclz %v308
        %v310 = vsub.s32 %v309, 2
        %vm311 = vcmp.gt.s32.totalorder 0, %v310
        %v312 = vsel %vm311, 0, %v310
        %v313 = vsub.s32 32, %v312
        %v314 = vshll.u32 %v305, %v312
        %v315 = vshrl.u32 %v297, %v313
        %v316 = vor.u32 %v314, %v315
        %v317 = vsub.s32 4294967266, %v312
        %v318 = vadd.s32 %v317, 127
        %v319 = vshll.u32 %v318, 23
        %v320 = vor.u32 4788187, %v319
        %v321 = vand.u32 2147483647, %v320
        %v323 = vcvt.s32.f32 %v316
        %v324 = vmul.f32 %v323, %v321
        %v325 = vxor.u32 %v324, 2147483648
        %v326 = vsel %vm243, %v325, %v324
        %v327 = vsub.s32 4, %v303
        %v328 = vsel %vm243, %v327, %v303
        %v329 = vsel %vm242, %v136, %v326
        %v330 = vsel %vm242, 0, %v328
        %v331 = vcosq.f32.pop %v329
        %v332 = vsinq.f32.pop %v329
        %vm333 = vweird.f32 %v136
        %v334 = vand.u32 %v330, 3
        %vm335 = vcmp.lt.s32.totalorder %v334, 2
        %vm336 = vcmp.eq.s32.totalorder %v334, 0
        %v337 = vxor.u32 %v332, 2147483648
        %v338 = vsel %vm336, %v331, %v337
        %vm339 = vcmp.eq.s32.totalorder %v334, 2
        %v340 = vxor.u32 %v331, 2147483648
        %v341 = vsel %vm339, %v340, %v332
        %v342 = vsel %vm335, %v338, %v341
        %v343 = vsel %vm333, nan, %v342
        %v344 = vmul.f32 %v240, -0.31830987
        %v345 = vadd.f32 %v133, %v344
        %v346 = vmul.f32 %v240, %v343
        %v347 = vadd.f32 %v346, %v346
        %v348 = vmul.f32 %v343, %v343
        %v349 = vmul.f32 %v240, %v240
        %v350 = vsub.f32 %v348, %v349
        %v351 = vmul.f32 %v347, 0.15915494
        %v352 = vadd.f32 %v345, %v351
        %v353 = vmul.f32 %v347, %v343
        %v354 = vmul.f32 %v350, %v240
        %v355 = vadd.f32 %v353, %v354
        %v356 = vmul.f32 %v350, %v343
        %v357 = vmul.f32 %v347, %v240
        %v358 = vsub.f32 %v356, %v357
        %v359 = vmul.f32 %v355, -0.10610329
        %v360 = vadd.f32 %v352, %v359
        %v361 = vmul.f32 %v355, %v343
        %v362 = vmul.f32 %v358, %v240
        %v363 = vadd.f32 %v361, %v362
        %v364 = vmul.f32 %v358, %v343
        %v365 = vmul.f32 %v355, %v240
        %v366 = vsub.f32 %v364, %v365
        %v367 = vmul.f32 %v363, 0.07957747
        %v368 = vadd.f32 %v360, %v367
        %v369 = vmul.f32 %v363, %v343
        %v370 = vmul.f32 %v366, %v240
        %v371 = vadd.f32 %v369, %v370
        %v372 = vmul.f32 %v371, -0.06366198
        %v373 = vadd.f32 %v368, %v372
        %v374 = vmul.f32 %v373, 0.003921569
        %375 = vst [vmem:[%s131] sm:$0xff] %v374
        %s376 = sand.u32 %s52, 1
        %s377 = scalar_lea.sflag [#allocation4], %s376
        %s378 = sand.u32 %s52, 1
        %s379 = smul.addr %s378, 8
        %s380 = scalar_lea.vmem [#allocation5], %s379
        // Predicated region
        $region29: #{tpu_custom_call.1} parent=23 // pred_check
          %p381 = pneg %p62
        $region30: #{tpu_custom_call.1} parent=23 // pred_check_branch
          %383 = sbr.rel (%p381) target = $region32
        $region31: #{tpu_custom_call.1} parent=23 // pred_region
          %s385 = ssub.s32 128, 128
          %386 = vsyncadd %s377, %s385
          %s387 = smul.addr %s18, 128
          %s388 = scalar_lea.hbm %s1, %s387
          %s390 = sshll.u32 %s380, 4
          %s391 = int_to_ptr.vmem [resolvable:$true] %s390
          %393 = dma.vmem_to_hbm [thread:$0]  %s391, 128, %s388, %s377
        $region32: #{tpu_custom_call.1} parent=23 // pred_fallthru
          _
      $region24: #{tpu_custom_call.1} parent=5 // pred_fallthru
        _
      %p394 = scmp.le.s32.totalorder 2, %s13
      // Predicated region
      $region33: #{tpu_custom_call.1} parent=5 // pred_check
        %p395 = pneg %p394
      $region34: #{tpu_custom_call.1} parent=5 // pred_check_branch
        %397 = sbr.rel (%p395) target = $region36
      $region35: #{tpu_custom_call.1} parent=5 // pred_region
        %s398 = ssub.s32 %s13, 2
        // Predicated region
        $region37: #{tpu_custom_call.1} parent=35 // pred_check
          %p399 = pneg %p68
        $region38: #{tpu_custom_call.1} parent=35 // pred_check_branch
          %401 = sbr.rel (%p399) target = $region40
        $region39: #{tpu_custom_call.1} parent=35 // pred_region
          %s402 = sand.u32 %s53, 1
          %s403 = scalar_lea.sflag [#allocation4], %s402
          %s404 = sand.u32 %s53, 1
          %s405 = smul.addr %s404, 8
          %s406 = scalar_lea.vmem [#allocation5], %s405
          %407 = dma.done %s403, 128
        $region40: #{tpu_custom_call.1} parent=35 // pred_fallthru
          _
      $region36: #{tpu_custom_call.1} parent=5 // pred_fallthru
        _
    $region6: #{tpu_custom_call.1} parent=1 // loop_footer
      %s17 = sadd.s32 1, %s13
    $region7: #{tpu_custom_call.1} parent=1 // loop_footer_branch
      %12 = sbr.rel target = $region3
    $region8: #{tpu_custom_call.1} parent=1 // loop_exit
      _
    %408 = vsyncpa [#allocation3], 1
    %s409 = scalar_lea.sflag [#allocation3], 1
    %410 = vsyncpa %s409, 1
    %411 = vsyncpa [#allocation4], 1
    %s412 = scalar_lea.sflag [#allocation4], 1
    %413 = vsyncpa %s412, 1

</llo_original>
